<compile_context>
chip_gen: v7x
topology: tpu7x:2x2x1
jax: 0.10.0
libtpu: 0.0.40
codegen_flags: <defaults>
</compile_context>

<pallas_src>
import functools

import jax
import jax.numpy as jnp
from jax.experimental import pallas as pl
from jax.experimental.pallas import tpu as pltpu

_BN_EPS = 1e-5
_NEG_INF = -1e30        # finite "minus infinity" for padded classes -> no inf/nan math
_IN_FEATURES = 5
_OUT_PAD = 128          # classifier output padded 91 -> 128 (lane-aligned)

# Layers 1..5 + classifier, driven off one packed bf16 weight buffer
# (256 rows x 896 cols) and one packed f32 bias buffer (1 x 1152).
#   (din_pad, dout_pad, weight col offset, bias offset, apply ReLU)
_MXU_LAYERS = (
    (256, 128,   0,  256, True),    # feature : Linear(256,128)+BN+ReLU
    (128, 128, 128,  384, True),    # feature : Linear(128, 64)+BN+ReLU (out zero-padded)
    (128, 256, 256,  512, True),    # feature2: Linear( 64,256)+BN+ReLU (in rows zero-padded)
    (256, 128, 512,  768, True),    # feature2: Linear(256,128)+BN+ReLU
    (128, 128, 640,  896, True),    # feature2: Linear(128, 64)+BN+ReLU (out zero-padded)
    (128, 128, 768, 1024, False),   # classifier Linear(64, num_classes) (cols padded)
)
_WPACK_COLS = 896
_BPACK_COLS = 1152
_B0_OFF, _B0_DIM = 0, 256


# ------------------------------ fused kernel ------------------------------- #

def _mlp_fused_kernel(x_ref, w0_ref, wp_ref, bp_ref, o_ref):
    """Whole-MLP forward for one batch tile.

    x_ref : [tile_b, 5]    f32 input features (no padding)
    w0_ref: [5, 256]       f32 layer-0 weight (BN folded)
    wp_ref: [256, 896]     bf16 packed weights, layers 1..5 + classifier (BN folded)
    bp_ref: [1, 1152]      f32 packed biases (classifier pad columns = -1e30)
    o_ref : [tile_b, 128]  f32 log-probs (classes zero-padded 91 -> 128)
    """
    x = x_ref[...]                                    # (tile_b, 5) f32
    w0 = w0_ref[...]                                  # (5, 256)   f32

    # Layer 0 (Linear(5,256)+BN+ReLU): K=5 is too small for the MXU, so do
    # 5 broadcast-FMAs on the VPU (exact, f32).
    y = x[:, 0:1] * w0[0:1, :]
    for k in range(1, _IN_FEATURES):
        y = y + x[:, k:k + 1] * w0[k:k + 1, :]
    y = y + bp_ref[:, _B0_OFF:_B0_OFF + _B0_DIM]
    h = jnp.maximum(y, 0.0).astype(jnp.bfloat16)

    # Layers 1..5 (+classifier) on the MXU: bf16 operands, f32 accumulation.
    # Zero-padded rows/cols keep results exact; Dropout is identity in eval.
    for din, dout, wo, bo, relu in _MXU_LAYERS:
        w = wp_ref[0:din, wo:wo + dout]               # bf16 (din, dout), static slice
        y = jnp.dot(h, w, preferred_element_type=jnp.float32)
        y = y + bp_ref[:, bo:bo + dout]               # f32 epilogue (v5e-safe)
        if relu:
            h = jnp.maximum(y, 0.0).astype(jnp.bfloat16)

    # log_softmax over 128 cols; padded classes carry logits == -1e30 (baked
    # into the classifier bias, weight cols are zero) -> exp() == 0 exactly.
    logits = y
    m = jnp.max(logits, axis=-1, keepdims=True)
    z = logits - m
    lse = jnp.log(jnp.sum(jnp.exp(z), axis=-1, keepdims=True))
    o_ref[...] = z - lse


# --------------------------------- wrapper --------------------------------- #

def _round_up(n, m):
    return ((n + m - 1) // m) * m


def _choose_tile(b_in):
    if b_in <= 64:
        # one tile; multiple of 16 so bf16 activations fill packed (16,128) vreg tiles
        return _round_up(max(b_in, 16), 16)
    # >= 2 tiles so v7x's two TensorCores both get work via the "parallel" axis;
    # tiles capped at 2048 rows (~12 MiB VMEM incl. double-buffered I/O) to keep
    # a long M feeding the MXU while amortizing the ~0.35us per-grid-step cost.
    n_tiles = max(2, -(-b_in // 2048))
    return _round_up(-(-b_in // n_tiles), 16)


def mlp_forward(x, params, *, num_classes):
    """x: [B, 5] float; params from build_params(). Returns [B, num_classes] f32 log-probs."""
    w0, wpacked, bpacked = params
    b_in, f_in = x.shape
    assert f_in == _IN_FEATURES and w0.shape[0] == _IN_FEATURES

    tile_b = _choose_tile(b_in)
    b_pad = _round_up(b_in, tile_b)

    x_p = x.astype(jnp.float32)
    if b_pad != b_in:
        # Note: at tiny batches this pad and the final slice are wrapper-side XLA
        # ops comparable in cost to the kernel; fold into the caller if the
        # production batch is already a fixed multiple of 16.
        x_p = jnp.pad(x_p, ((0, b_pad - b_in), (0, 0)))

    out = pl.pallas_call(
        _mlp_fused_kernel,
        out_shape=jax.ShapeDtypeStruct((b_pad, _OUT_PAD), jnp.float32),
        grid=(b_pad // tile_b,),
        in_specs=[
            pl.BlockSpec((tile_b, _IN_FEATURES), lambda i: (i, 0)),  # x: batch-tiled
            pl.BlockSpec(w0.shape, lambda i: (0, 0)),                # VMEM-resident
            pl.BlockSpec(wpacked.shape, lambda i: (0, 0)),           # VMEM-resident
            pl.BlockSpec(bpacked.shape, lambda i: (0, 0)),           # VMEM-resident
        ],
        out_specs=pl.BlockSpec((tile_b, _OUT_PAD), lambda i: (i, 0)),
        compiler_params=pltpu.CompilerParams(
            dimension_semantics=("parallel",),
            vmem_limit_bytes=32 * 1024 * 1024),
    )(x_p, w0, wpacked, bpacked)

    return out[:b_in, :num_classes]


# --------------------------- parameter construction ------------------------ #

def _init_linear(key, din, dout):
    """Deterministic Linear params (PyTorch layout: W [dout, din], b [dout])."""
    kw, kb = jax.random.split(key)
    bound = 1.0 / jnp.sqrt(jnp.float32(din))
    w = jax.random.uniform(kw, (dout, din), jnp.float32, -bound, bound)
    b = jax.random.uniform(kb, (dout,), jnp.float32, -bound, bound)
    return w, b


def _init_bn(key, dim):
    """Deterministic BatchNorm1d params (gamma, beta, running_mean, running_var)."""
    k1, k2, k3, k4 = jax.random.split(key, 4)
    gamma = 1.0 + 0.1 * jax.random.normal(k1, (dim,), jnp.float32)
    beta = 0.1 * jax.random.normal(k2, (dim,), jnp.float32)
    rmean = 0.05 * jax.random.normal(k3, (dim,), jnp.float32)
    rvar = 1.0 + 0.1 * jax.random.uniform(k4, (dim,), jnp.float32)
    return gamma, beta, rmean, rvar


def _fold_linear_bn(w, b, gamma, beta, rmean, rvar):
    """Exact eval-mode BN fold. Returns (W [din, dout] f32, b [dout] f32)."""
    scale = gamma / jnp.sqrt(rvar + _BN_EPS)           # [dout]
    w_folded = jnp.transpose(w * scale[:, None])       # [din, dout]
    b_folded = (b - rmean) * scale + beta               # [dout]
    return w_folded, b_folded


def build_params(num_classes=91, seed=0):
    """Deterministic module params, BN-folded and packed for the fused kernel.

    Returns (w0 [5,256] f32, wpacked [256,896] bf16, bpacked [1,1152] f32).
    """
    assert num_classes <= _OUT_PAD
    key = jax.random.PRNGKey(seed)
    layer_dims = [(5, 256), (256, 128), (128, 64),     # feature
                  (64, 256), (256, 128), (128, 64)]    # feature2
    folded = []
    for din, dout in layer_dims:
        key, kl, kbn = jax.random.split(key, 3)
        w, b = _init_linear(kl, din, dout)
        folded.append(_fold_linear_bn(w, b, *_init_bn(kbn, dout)))
    key, kl = jax.random.split(key)
    wc, bc = _init_linear(kl, 64, num_classes)          # classifier (no BN)
    folded.append((jnp.transpose(wc), bc))              # (64, num_classes)

    # layer 0 stays f32 (VPU FMA path in the kernel)
    w0 = folded[0][0]

    wpacked = jnp.zeros((256, _WPACK_COLS), jnp.float32)
    bpacked = jnp.zeros((1, _BPACK_COLS), jnp.float32)
    bpacked = bpacked.at[0, _B0_OFF:_B0_OFF + _B0_DIM].set(folded[0][1])
    for (w, b), (_, _, wo, bo, _) in zip(folded[1:], _MXU_LAYERS):
        din, dout = w.shape
        wpacked = wpacked.at[0:din, wo:wo + dout].set(w)   # zero rows/cols = exact pad
        bpacked = bpacked.at[0, bo:bo + dout].set(b)
    # Bake the class-padding mask into the classifier bias: padded weight cols
    # are zero, so padded logits == bias == -1e30 -> exp() == 0 in log_softmax.
    _, clf_dout_pad, _, clf_bo, _ = _MXU_LAYERS[-1]
    bpacked = bpacked.at[0, clf_bo + num_classes:clf_bo + clf_dout_pad].set(_NEG_INF)

    return (w0.astype(jnp.float32),
            wpacked.astype(jnp.bfloat16),
            bpacked.astype(jnp.float32))


# ------------------------------ reference (test) ---------------------------- #

def _reference_forward(x, params, *, num_classes):
    """Pure-JAX/XLA forward mirroring the kernel's dtype choices, for testing."""
    w0, wpacked, bpacked = params
    bp = bpacked[0]
    y = jnp.dot(x.astype(jnp.float32), w0) + bp[_B0_OFF:_B0_OFF + _B0_DIM]
    h = jnp.maximum(y, 0.0).astype(jnp.bfloat16)
    for din, dout, wo, bo, relu in _MXU_LAYERS:
        y = jnp.dot(h, wpacked[0:din, wo:wo + dout],
                    preferred_element_type=jnp.float32) + bp[bo:bo + dout]
        if relu:
            h = jnp.maximum(y, 0.0).astype(jnp.bfloat16)
    return jax.nn.log_softmax(y, axis=-1)[:, :num_classes]


# ----------------------------------- main ----------------------------------- #

if __name__ == "__main__":
    batch = 8
    num_classes = 91
    x = jax.random.normal(jax.random.PRNGKey(0), (batch, _IN_FEATURES), jnp.float32)

    params = build_params(num_classes=num_classes, seed=0)
    fwd = jax.jit(functools.partial(mlp_forward, num_classes=num_classes))
    out = jax.block_until_ready(fwd(x, params))

    assert out.shape == (batch, num_classes)
    # log_softmax rows must exponentiate-and-sum to ~1
    row_sums = jnp.sum(jnp.exp(out), axis=1)
    assert bool(jnp.all(jnp.abs(row_sums - 1.0) < 1e-3))
    # match the pure-JAX reference built from the same folded/packed params
    ref = _reference_forward(x, params, num_classes=num_classes)
    assert bool(jnp.all(jnp.abs(out - ref) < 2e-2))

    print("KERNEL_OK")
</pallas_src>

<mosaic_0001>
module attributes {stable_mosaic.version = 11 : i64} {
  func.func @_mlp_fused_kernel(%arg0: i32, %arg1: memref<16x5xf32, #tpu.memory_space<vmem>>, %arg2: memref<5x256xf32, #tpu.memory_space<vmem>>, %arg3: memref<256x896xbf16, #tpu.memory_space<vmem>>, %arg4: memref<1x1152xf32, #tpu.memory_space<vmem>>, %arg5: memref<16x128xf32, #tpu.memory_space<vmem>>) attributes {dimension_semantics = [#tpu.dimension_semantics<parallel>], iteration_bounds = array<i64: 1>, scalar_prefetch = 0 : i64, scratch_operands = 0 : i64, tpu.core_type = #tpu.core_type<tc>, window_params = [{transform_indices = @transform_0, window_bounds = array<i64: 16, 5>}, {pipeline_mode = #tpu.pipeline_mode<synchronous>, transform_indices = @transform_1, window_bounds = array<i64: 5, 256>}, {pipeline_mode = #tpu.pipeline_mode<synchronous>, transform_indices = @transform_2, window_bounds = array<i64: 256, 896>}, {pipeline_mode = #tpu.pipeline_mode<synchronous>, transform_indices = @transform_3, window_bounds = array<i64: 1, 1152>}, {transform_indices = @transform_4, window_bounds = array<i64: 16, 128>}]} {
    %c0 = arith.constant 0 : index
    %c0_0 = arith.constant 0 : index
    %0 = vector.load %arg1[%c0, %c0_0] : memref<16x5xf32, #tpu.memory_space<vmem>>, vector<16x5xf32>
    %c0_1 = arith.constant 0 : index
    %c0_2 = arith.constant 0 : index
    %1 = vector.load %arg2[%c0_1, %c0_2] : memref<5x256xf32, #tpu.memory_space<vmem>>, vector<5x256xf32>
    %2 = vector.extract_strided_slice %0 {offsets = [0, 0], sizes = [16, 1], strides = [1, 1]} : vector<16x5xf32> to vector<16x1xf32>
    %3 = vector.extract_strided_slice %1 {offsets = [0, 0], sizes = [1, 256], strides = [1, 1]} : vector<5x256xf32> to vector<1x256xf32>
    %4 = vector.broadcast %2 : vector<16x1xf32> to vector<16x256xf32>
    %5 = vector.broadcast %3 : vector<1x256xf32> to vector<16x256xf32>
    %6 = arith.mulf %4, %5 : vector<16x256xf32>
    %7 = vector.extract_strided_slice %0 {offsets = [0, 1], sizes = [16, 1], strides = [1, 1]} : vector<16x5xf32> to vector<16x1xf32>
    %8 = vector.extract_strided_slice %1 {offsets = [1, 0], sizes = [1, 256], strides = [1, 1]} : vector<5x256xf32> to vector<1x256xf32>
    %9 = vector.broadcast %7 : vector<16x1xf32> to vector<16x256xf32>
    %10 = vector.broadcast %8 : vector<1x256xf32> to vector<16x256xf32>
    %11 = arith.mulf %9, %10 : vector<16x256xf32>
    %12 = arith.addf %6, %11 : vector<16x256xf32>
    %13 = vector.extract_strided_slice %0 {offsets = [0, 2], sizes = [16, 1], strides = [1, 1]} : vector<16x5xf32> to vector<16x1xf32>
    %14 = vector.extract_strided_slice %1 {offsets = [2, 0], sizes = [1, 256], strides = [1, 1]} : vector<5x256xf32> to vector<1x256xf32>
    %15 = vector.broadcast %13 : vector<16x1xf32> to vector<16x256xf32>
    %16 = vector.broadcast %14 : vector<1x256xf32> to vector<16x256xf32>
    %17 = arith.mulf %15, %16 : vector<16x256xf32>
    %18 = arith.addf %12, %17 : vector<16x256xf32>
    %19 = vector.extract_strided_slice %0 {offsets = [0, 3], sizes = [16, 1], strides = [1, 1]} : vector<16x5xf32> to vector<16x1xf32>
    %20 = vector.extract_strided_slice %1 {offsets = [3, 0], sizes = [1, 256], strides = [1, 1]} : vector<5x256xf32> to vector<1x256xf32>
    %21 = vector.broadcast %19 : vector<16x1xf32> to vector<16x256xf32>
    %22 = vector.broadcast %20 : vector<1x256xf32> to vector<16x256xf32>
    %23 = arith.mulf %21, %22 : vector<16x256xf32>
    %24 = arith.addf %18, %23 : vector<16x256xf32>
    %25 = vector.extract_strided_slice %0 {offsets = [0, 4], sizes = [16, 1], strides = [1, 1]} : vector<16x5xf32> to vector<16x1xf32>
    %26 = vector.extract_strided_slice %1 {offsets = [4, 0], sizes = [1, 256], strides = [1, 1]} : vector<5x256xf32> to vector<1x256xf32>
    %27 = vector.broadcast %25 : vector<16x1xf32> to vector<16x256xf32>
    %28 = vector.broadcast %26 : vector<1x256xf32> to vector<16x256xf32>
    %29 = arith.mulf %27, %28 : vector<16x256xf32>
    %30 = arith.addf %24, %29 : vector<16x256xf32>
    %c0_3 = arith.constant 0 : index
    %c0_4 = arith.constant 0 : index
    %31 = vector.load %arg4[%c0_3, %c0_4] : memref<1x1152xf32, #tpu.memory_space<vmem>>, vector<1x256xf32>
    %32 = vector.broadcast %31 : vector<1x256xf32> to vector<16x256xf32>
    %33 = arith.addf %30, %32 : vector<16x256xf32>
    %cst = arith.constant 0.000000e+00 : f32
    %34 = vector.broadcast %cst : f32 to vector<16x256xf32>
    %35 = arith.maximumf %33, %34 : vector<16x256xf32>
    %36 = arith.truncf %35 : vector<16x256xf32> to vector<16x256xbf16>
    %c0_5 = arith.constant 0 : index
    %c0_6 = arith.constant 0 : index
    %37 = vector.load %arg3[%c0_5, %c0_6] : memref<256x896xbf16, #tpu.memory_space<vmem>>, vector<256x128xbf16>
    %cst_7 = arith.constant dense<0.000000e+00> : vector<16x128xf32>
    %38 = tpu.matmul %36, %37, %cst_7 {dimension_numbers = #tpu.dot_dimension_numbers<[1], [0], [0], [1], [0, 0, 1, 1], [], []>} : vector<16x256xbf16>, vector<256x128xbf16>, vector<16x128xf32> -> vector<16x128xf32>
    %c0_8 = arith.constant 0 : index
    %c256 = arith.constant 256 : index
    %39 = vector.load %arg4[%c0_8, %c256] : memref<1x1152xf32, #tpu.memory_space<vmem>>, vector<1x128xf32>
    %40 = vector.broadcast %39 : vector<1x128xf32> to vector<16x128xf32>
    %41 = arith.addf %38, %40 : vector<16x128xf32>
    %cst_9 = arith.constant 0.000000e+00 : f32
    %42 = vector.broadcast %cst_9 : f32 to vector<16x128xf32>
    %43 = arith.maximumf %41, %42 : vector<16x128xf32>
    %44 = arith.truncf %43 : vector<16x128xf32> to vector<16x128xbf16>
    %c0_10 = arith.constant 0 : index
    %c128 = arith.constant 128 : index
    %45 = vector.load %arg3[%c0_10, %c128] : memref<256x896xbf16, #tpu.memory_space<vmem>>, vector<128x128xbf16>
    %cst_11 = arith.constant dense<0.000000e+00> : vector<16x128xf32>
    %46 = tpu.matmul %44, %45, %cst_11 {dimension_numbers = #tpu.dot_dimension_numbers<[1], [0], [0], [1], [0, 0, 1, 1], [], []>} : vector<16x128xbf16>, vector<128x128xbf16>, vector<16x128xf32> -> vector<16x128xf32>
    %c0_12 = arith.constant 0 : index
    %c384 = arith.constant 384 : index
    %47 = vector.load %arg4[%c0_12, %c384] : memref<1x1152xf32, #tpu.memory_space<vmem>>, vector<1x128xf32>
    %48 = vector.broadcast %47 : vector<1x128xf32> to vector<16x128xf32>
    %49 = arith.addf %46, %48 : vector<16x128xf32>
    %cst_13 = arith.constant 0.000000e+00 : f32
    %50 = vector.broadcast %cst_13 : f32 to vector<16x128xf32>
    %51 = arith.maximumf %49, %50 : vector<16x128xf32>
    %52 = arith.truncf %51 : vector<16x128xf32> to vector<16x128xbf16>
    %c0_14 = arith.constant 0 : index
    %c256_15 = arith.constant 256 : index
    %53 = vector.load %arg3[%c0_14, %c256_15] : memref<256x896xbf16, #tpu.memory_space<vmem>>, vector<128x256xbf16>
    %cst_16 = arith.constant dense<0.000000e+00> : vector<16x256xf32>
    %54 = tpu.matmul %52, %53, %cst_16 {dimension_numbers = #tpu.dot_dimension_numbers<[1], [0], [0], [1], [0, 0, 1, 1], [], []>} : vector<16x128xbf16>, vector<128x256xbf16>, vector<16x256xf32> -> vector<16x256xf32>
    %c0_17 = arith.constant 0 : index
    %c512 = arith.constant 512 : index
    %55 = vector.load %arg4[%c0_17, %c512] : memref<1x1152xf32, #tpu.memory_space<vmem>>, vector<1x256xf32>
    %56 = vector.broadcast %55 : vector<1x256xf32> to vector<16x256xf32>
    %57 = arith.addf %54, %56 : vector<16x256xf32>
    %cst_18 = arith.constant 0.000000e+00 : f32
    %58 = vector.broadcast %cst_18 : f32 to vector<16x256xf32>
    %59 = arith.maximumf %57, %58 : vector<16x256xf32>
    %60 = arith.truncf %59 : vector<16x256xf32> to vector<16x256xbf16>
    %c0_19 = arith.constant 0 : index
    %c512_20 = arith.constant 512 : index
    %61 = vector.load %arg3[%c0_19, %c512_20] : memref<256x896xbf16, #tpu.memory_space<vmem>>, vector<256x128xbf16>
    %cst_21 = arith.constant dense<0.000000e+00> : vector<16x128xf32>
    %62 = tpu.matmul %60, %61, %cst_21 {dimension_numbers = #tpu.dot_dimension_numbers<[1], [0], [0], [1], [0, 0, 1, 1], [], []>} : vector<16x256xbf16>, vector<256x128xbf16>, vector<16x128xf32> -> vector<16x128xf32>
    %c0_22 = arith.constant 0 : index
    %c768 = arith.constant 768 : index
    %63 = vector.load %arg4[%c0_22, %c768] : memref<1x1152xf32, #tpu.memory_space<vmem>>, vector<1x128xf32>
    %64 = vector.broadcast %63 : vector<1x128xf32> to vector<16x128xf32>
    %65 = arith.addf %62, %64 : vector<16x128xf32>
    %cst_23 = arith.constant 0.000000e+00 : f32
    %66 = vector.broadcast %cst_23 : f32 to vector<16x128xf32>
    %67 = arith.maximumf %65, %66 : vector<16x128xf32>
    %68 = arith.truncf %67 : vector<16x128xf32> to vector<16x128xbf16>
    %c0_24 = arith.constant 0 : index
    %c640 = arith.constant 640 : index
    %69 = vector.load %arg3[%c0_24, %c640] : memref<256x896xbf16, #tpu.memory_space<vmem>>, vector<128x128xbf16>
    %cst_25 = arith.constant dense<0.000000e+00> : vector<16x128xf32>
    %70 = tpu.matmul %68, %69, %cst_25 {dimension_numbers = #tpu.dot_dimension_numbers<[1], [0], [0], [1], [0, 0, 1, 1], [], []>} : vector<16x128xbf16>, vector<128x128xbf16>, vector<16x128xf32> -> vector<16x128xf32>
    %c0_26 = arith.constant 0 : index
    %c896 = arith.constant 896 : index
    %71 = vector.load %arg4[%c0_26, %c896] : memref<1x1152xf32, #tpu.memory_space<vmem>>, vector<1x128xf32>
    %72 = vector.broadcast %71 : vector<1x128xf32> to vector<16x128xf32>
    %73 = arith.addf %70, %72 : vector<16x128xf32>
    %cst_27 = arith.constant 0.000000e+00 : f32
    %74 = vector.broadcast %cst_27 : f32 to vector<16x128xf32>
    %75 = arith.maximumf %73, %74 : vector<16x128xf32>
    %76 = arith.truncf %75 : vector<16x128xf32> to vector<16x128xbf16>
    %c0_28 = arith.constant 0 : index
    %c768_29 = arith.constant 768 : index
    %77 = vector.load %arg3[%c0_28, %c768_29] : memref<256x896xbf16, #tpu.memory_space<vmem>>, vector<128x128xbf16>
    %cst_30 = arith.constant dense<0.000000e+00> : vector<16x128xf32>
    %78 = tpu.matmul %76, %77, %cst_30 {dimension_numbers = #tpu.dot_dimension_numbers<[1], [0], [0], [1], [0, 0, 1, 1], [], []>} : vector<16x128xbf16>, vector<128x128xbf16>, vector<16x128xf32> -> vector<16x128xf32>
    %c0_31 = arith.constant 0 : index
    %c1024 = arith.constant 1024 : index
    %79 = vector.load %arg4[%c0_31, %c1024] : memref<1x1152xf32, #tpu.memory_space<vmem>>, vector<1x128xf32>
    %80 = vector.broadcast %79 : vector<1x128xf32> to vector<16x128xf32>
    %81 = arith.addf %78, %80 : vector<16x128xf32>
    %cst_32 = arith.constant dense<0xFF800000> : vector<16xf32>
    %82 = vector.multi_reduction <maximumf>, %81, %cst_32 [1] : vector<16x128xf32> to vector<16xf32>
    %83 = vector.shape_cast %82 : vector<16xf32> to vector<16x1xf32>
    %84 = vector.broadcast %83 : vector<16x1xf32> to vector<16x128xf32>
    %85 = arith.subf %81, %84 : vector<16x128xf32>
    %86 = math.exp %85 : vector<16x128xf32>
    %cst_33 = arith.constant dense<0.000000e+00> : vector<16xf32>
    %87 = vector.multi_reduction <add>, %86, %cst_33 [1] : vector<16x128xf32> to vector<16xf32>
    %88 = vector.shape_cast %87 : vector<16xf32> to vector<16x1xf32>
    %89 = math.log %88 : vector<16x1xf32>
    %90 = vector.broadcast %89 : vector<16x1xf32> to vector<16x128xf32>
    %91 = arith.subf %85, %90 : vector<16x128xf32>
    %c0_34 = arith.constant 0 : index
    %c0_35 = arith.constant 0 : index
    %92 = vector.load %arg5[%c0_34, %c0_35] : memref<16x128xf32, #tpu.memory_space<vmem>>, vector<16x128xf32>
    tpu.vector_store %arg5[%c0_34, %c0_35], %91 {strides = array<i32>} : memref<16x128xf32, #tpu.memory_space<vmem>>, vector<16x128xf32>,
    return
  }
  func.func @transform_0(%arg0: i32) -> (i32, i32) {
    %c0_i32 = arith.constant 0 : i32
    %c0_i32_0 = arith.constant 0 : i32
    return %arg0, %c0_i32 : i32, i32
  }
  func.func @transform_1(%arg0: i32) -> (i32, i32) {
    %c0_i32 = arith.constant 0 : i32
    %c0_i32_0 = arith.constant 0 : i32
    %c0_i32_1 = arith.constant 0 : i32
    return %c0_i32, %c0_i32_0 : i32, i32
  }
  func.func @transform_2(%arg0: i32) -> (i32, i32) {
    %c0_i32 = arith.constant 0 : i32
    %c0_i32_0 = arith.constant 0 : i32
    %c0_i32_1 = arith.constant 0 : i32
    return %c0_i32, %c0_i32_0 : i32, i32
  }
  func.func @transform_3(%arg0: i32) -> (i32, i32) {
    %c0_i32 = arith.constant 0 : i32
    %c0_i32_0 = arith.constant 0 : i32
    %c0_i32_1 = arith.constant 0 : i32
    return %c0_i32, %c0_i32_0 : i32, i32
  }
  func.func @transform_4(%arg0: i32) -> (i32, i32) {
    %c0_i32 = arith.constant 0 : i32
    %c0_i32_0 = arith.constant 0 : i32
    return %arg0, %c0_i32 : i32, i32
  }
}

</mosaic_0001>

<llo_original>
// kernel: mlp_forward.1
$region0: #{mlp_forward.1}
  #allocation0 [shape = 'u32[]', space=smem, size = 0x4, offset = 0x4, fixed_abs, tag = 'smem constant byte address 0x4 - core index']
  #allocation1 [shape = 'u32[144,128]{1,0:T(1,128)}', space=vmem, size = 0x12000, scoped, tag = 'internal scratch']
  %s0 = inlined_call_operand.vmem [shape: f32[16,5], index: 0, kind: input, shape index: {}]
  %s1 = inlined_call_operand.vmem [shape: f32[5,256], index: 1, kind: input, shape index: {}]
  %s2 = inlined_call_operand.hbm [shape: bf16[256,896], index: 2, kind: input, shape index: {}]
  %s3 = inlined_call_operand.vmem [shape: f32[1,1152], index: 3, kind: input, shape index: {}]
  %s4 = inlined_call_operand.vmem [shape: f32[16,128], index: 4, kind: output, shape index: {}]
  %s5 = sld [smem:[#allocation0]]
  $region30: #{mlp_forward.1} parent=0
    _
  %s7 = ssub.s32 1, %s5
  %s8 = scalar_select 0, %s7, %s5
  $region1: #{mlp_forward.1} parent=0
    #allocation2 [shape = 'u8[458752]{0}', space=vmem, size = 0x70000, scoped, tag = 'input window, operand 2, single buffered']
    #allocation3 [shape = 's32[1]{0}', space=sflag, size = 0x4, scoped, tag = 'scoped memory for mlp_forward.1']
    %9 = vsyncpa [#allocation3], 0
    // Predicated region
    $region2: #{mlp_forward.1} parent=1 // pred_check
      _
    $region3: #{mlp_forward.1} parent=1 // pred_check_branch
      %11 = sbr.rel (0) target = $region5
    $region4: #{mlp_forward.1} parent=1 // pred_region
      _
    $region5: #{mlp_forward.1} parent=1 // pred_fallthru
      _
    // Predicated region
    $region6: #{mlp_forward.1} parent=1 // pred_check
      _
    $region7: #{mlp_forward.1} parent=1 // pred_check_branch
      %13 = sbr.rel (0) target = $region9
    $region8: #{mlp_forward.1} parent=1 // pred_region
      _
    $region9: #{mlp_forward.1} parent=1 // pred_fallthru
      _
    // Predicated region
    $region10: #{mlp_forward.1} parent=1 // pred_check
      _
    $region11: #{mlp_forward.1} parent=1 // pred_check_branch
      %15 = sbr.rel (0) target = $region13
    $region12: #{mlp_forward.1} parent=1 // pred_region
      %s17 = ssub.s32 14336, 14336
      %18 = vsyncadd [#allocation3], %s17
      %s19 = sshll.u32 [#allocation2], 4
      %s20 = int_to_ptr.vmem [resolvable:$true] %s19
      %25 = dma.hbm_to_vmem [thread:$0]  %s2, 14336, %s20, [#allocation3], 448, 448, 28
    $region13: #{mlp_forward.1} parent=1 // pred_fallthru
      _
    // Predicated region
    $region14: #{mlp_forward.1} parent=1 // pred_check
      _
    $region15: #{mlp_forward.1} parent=1 // pred_check_branch
      %27 = sbr.rel (0) target = $region17
    $region16: #{mlp_forward.1} parent=1 // pred_region
      _
    $region17: #{mlp_forward.1} parent=1 // pred_fallthru
      _
    // Predicated region
    $region18: #{mlp_forward.1} parent=1 // pred_check
      _
    $region19: #{mlp_forward.1} parent=1 // pred_check_branch
      %29 = sbr.rel (0) target = $region21
    $region20: #{mlp_forward.1} parent=1 // pred_region
      %30 = dma.done [#allocation3], 14336
    $region21: #{mlp_forward.1} parent=1 // pred_fallthru
      _
    %v32 = vld [vmem:[%s0] sm:$0xff]
    %v33 = vld [vmem:[%s0 + $0x8] sm:$0xff]
    %v34 = vld [vmem:[%s1] sm:$0x1f]
    %v35 = vld [vmem:[%s1 + $0x8] sm:$0x1f]
    %37 = vset.pattern.permute.xlu0 0
    %38 = vperm.xlu0 %37, %v32
    %v39 = vpop.permute.xlu0 %38
    %42 = vset.pattern.permute.xlu0 0
    %43 = vperm.xlu0 %42, %v33
    %v44 = vpop.permute.xlu0 %43
    %v46 = vlaneseq
    %v47 = vshrl.u32 %v46, 7
    %v48 = vsub.s32 0, %v47
    %v49 = vrot.slane %v34, %v48
    %v50 = vlaneseq
    %v51 = vshrl.u32 %v50, 7
    %v52 = vsub.s32 0, %v51
    %v53 = vrot.slane %v35, %v52
    %v54 = vmul.f32 %v39, %v49
    %v55 = vmul.f32 %v39, %v53
    %v56 = vmul.f32 %v44, %v49
    %v57 = vmul.f32 %v44, %v53
    %58 = vset.pattern.permute.xlu0 1
    %59 = vperm.xlu0 %58, %v32
    %v60 = vpop.permute.xlu0 %59
    %62 = vset.pattern.permute.xlu0 1
    %63 = vperm.xlu0 %62, %v33
    %v64 = vpop.permute.xlu0 %63
    %v66 = vlaneseq
    %v67 = vshrl.u32 %v66, 7
    %v68 = vsub.s32 1, %v67
    %v69 = vrot.slane %v34, %v68
    %v70 = vlaneseq
    %v71 = vshrl.u32 %v70, 7
    %v72 = vsub.s32 1, %v71
    %v73 = vrot.slane %v35, %v72
    %v74 = vmul.f32 %v60, %v69
    %v75 = vmul.f32 %v60, %v73
    %v76 = vmul.f32 %v64, %v69
    %v77 = vmul.f32 %v64, %v73
    %v78 = vadd.f32 %v54, %v74
    %v79 = vadd.f32 %v55, %v75
    %v80 = vadd.f32 %v56, %v76
    %v81 = vadd.f32 %v57, %v77
    %82 = vset.pattern.permute.xlu0 2
    %83 = vperm.xlu0 %82, %v32
    %v84 = vpop.permute.xlu0 %83
    %86 = vset.pattern.permute.xlu0 2
    %87 = vperm.xlu0 %86, %v33
    %v88 = vpop.permute.xlu0 %87
    %v90 = vlaneseq
    %v91 = vshrl.u32 %v90, 7
    %v92 = vsub.s32 2, %v91
    %v93 = vrot.slane %v34, %v92
    %v94 = vlaneseq
    %v95 = vshrl.u32 %v94, 7
    %v96 = vsub.s32 2, %v95
    %v97 = vrot.slane %v35, %v96
    %v98 = vmul.f32 %v84, %v93
    %v99 = vmul.f32 %v84, %v97
    %v100 = vmul.f32 %v88, %v93
    %v101 = vmul.f32 %v88, %v97
    %v102 = vadd.f32 %v78, %v98
    %v103 = vadd.f32 %v79, %v99
    %v104 = vadd.f32 %v80, %v100
    %v105 = vadd.f32 %v81, %v101
    %106 = vset.pattern.permute.xlu0 3
    %107 = vperm.xlu0 %106, %v32
    %v108 = vpop.permute.xlu0 %107
    %110 = vset.pattern.permute.xlu0 3
    %111 = vperm.xlu0 %110, %v33
    %v112 = vpop.permute.xlu0 %111
    %v114 = vlaneseq
    %v115 = vshrl.u32 %v114, 7
    %v116 = vsub.s32 3, %v115
    %v117 = vrot.slane %v34, %v116
    %v118 = vlaneseq
    %v119 = vshrl.u32 %v118, 7
    %v120 = vsub.s32 3, %v119
    %v121 = vrot.slane %v35, %v120
    %v122 = vmul.f32 %v108, %v117
    %v123 = vmul.f32 %v108, %v121
    %v124 = vmul.f32 %v112, %v117
    %v125 = vmul.f32 %v112, %v121
    %v126 = vadd.f32 %v102, %v122
    %v127 = vadd.f32 %v103, %v123
    %v128 = vadd.f32 %v104, %v124
    %v129 = vadd.f32 %v105, %v125
    %130 = vset.pattern.permute.xlu0 4
    %131 = vperm.xlu0 %130, %v32
    %v132 = vpop.permute.xlu0 %131
    %134 = vset.pattern.permute.xlu0 4
    %135 = vperm.xlu0 %134, %v33
    %v136 = vpop.permute.xlu0 %135
    %v138 = vlaneseq
    %v139 = vshrl.u32 %v138, 7
    %v140 = vsub.s32 4, %v139
    %v141 = vrot.slane %v34, %v140
    %v142 = vlaneseq
    %v143 = vshrl.u32 %v142, 7
    %v144 = vsub.s32 4, %v143
    %v145 = vrot.slane %v35, %v144
    %v146 = vmul.f32 %v132, %v141
    %v147 = vmul.f32 %v132, %v145
    %v148 = vmul.f32 %v136, %v141
    %v149 = vmul.f32 %v136, %v145
    %v150 = vadd.f32 %v126, %v146
    %v151 = vadd.f32 %v127, %v147
    %v152 = vadd.f32 %v128, %v148
    %v153 = vadd.f32 %v129, %v149
    %v154 = vld [vmem:[%s3] sm:$0x3]
    %v156 = vlaneseq
    %v157 = vshrl.u32 %v156, 7
    %v158 = vsub.s32 0, %v157
    %v159 = vrot.slane %v154, %v158
    %v160 = vlaneseq
    %v161 = vshrl.u32 %v160, 7
    %v162 = vsub.s32 1, %v161
    %v163 = vrot.slane %v154, %v162
    %v166 = vadd.f32 %v150, %v159
    %v167 = vadd.f32 %v151, %v163
    %v168 = vadd.f32 %v152, %v159
    %v169 = vadd.f32 %v153, %v163
    %v170 = vmax.f32 %v166, 0.0
    %v171 = vmax.f32 %v167, 0.0
    %v172 = vmax.f32 %v168, 0.0
    %v173 = vmax.f32 %v169, 0.0
    %v174 = vpack.c.bf16 %v172, %v170
    %v175 = vpack.c.bf16 %v173, %v171
    %v176 = vld [vmem:[#allocation2] sm:$0xf]
    %v177 = vld [vmem:[#allocation2 + $0x1c] sm:$0xf]
    %v178 = vld [vmem:[#allocation2 + $0x38] sm:$0xf]
    %v179 = vld [vmem:[#allocation2 + $0x54] sm:$0xf]
    %v180 = vld [vmem:[#allocation2 + $0x70] sm:$0xf]
    %v181 = vld [vmem:[#allocation2 + $0x8c] sm:$0xf]
    %v182 = vld [vmem:[#allocation2 + $0xa8] sm:$0xf]
    %v183 = vld [vmem:[#allocation2 + $0xc4] sm:$0xf]
    %v184 = vld [vmem:[#allocation2 + $0xe0] sm:$0xf]
    %v185 = vld [vmem:[#allocation2 + $0xfc] sm:$0xf]
    %v186 = vld [vmem:[#allocation2 + $0x118] sm:$0xf]
    %v187 = vld [vmem:[#allocation2 + $0x134] sm:$0xf]
    %v188 = vld [vmem:[#allocation2 + $0x150] sm:$0xf]
    %v189 = vld [vmem:[#allocation2 + $0x16c] sm:$0xf]
    %v190 = vld [vmem:[#allocation2 + $0x188] sm:$0xf]
    %v191 = vld [vmem:[#allocation2 + $0x1a4] sm:$0xf]
    %v192 = vld [vmem:[#allocation2 + $0x1c0] sm:$0xf]
    %v193 = vld [vmem:[#allocation2 + $0x1dc] sm:$0xf]
    %v194 = vld [vmem:[#allocation2 + $0x1f8] sm:$0xf]
    %v195 = vld [vmem:[#allocation2 + $0x214] sm:$0xf]
    %v196 = vld [vmem:[#allocation2 + $0x230] sm:$0xf]
    %v197 = vld [vmem:[#allocation2 + $0x24c] sm:$0xf]
    %v198 = vld [vmem:[#allocation2 + $0x268] sm:$0xf]
    %v199 = vld [vmem:[#allocation2 + $0x284] sm:$0xf]
    %v200 = vld [vmem:[#allocation2 + $0x2a0] sm:$0xf]
    %v201 = vld [vmem:[#allocation2 + $0x2bc] sm:$0xf]
    %v202 = vld [vmem:[#allocation2 + $0x2d8] sm:$0xf]
    %v203 = vld [vmem:[#allocation2 + $0x2f4] sm:$0xf]
    %v204 = vld [vmem:[#allocation2 + $0x310] sm:$0xf]
    %v205 = vld [vmem:[#allocation2 + $0x32c] sm:$0xf]
    %v206 = vld [vmem:[#allocation2 + $0x348] sm:$0xf]
    %v207 = vld [vmem:[#allocation2 + $0x364] sm:$0xf]
    %v208 = vld [vmem:[%s3 + $0x2] sm:$0x1]
    %v210 = vlaneseq
    %v211 = vshrl.u32 %v210, 7
    %v212 = vsub.s32 0, %v211
    %v213 = vrot.slane %v208, %v212
    %v247 = vunpack.c.l.b16 %v176
    %v248 = vunpack.c.l.b16 %v177
    %v249 = vunpack.c.l.b16 %v178
    %v250 = vunpack.c.l.b16 %v179
    %v251 = vunpack.c.l.b16 %v180
    %v252 = vunpack.c.l.b16 %v181
    %v253 = vunpack.c.l.b16 %v182
    %v254 = vunpack.c.l.b16 %v183
    %v255 = vunpack.c.l.b16 %v184
    %v256 = vunpack.c.l.b16 %v185
    %v257 = vunpack.c.l.b16 %v186
    %v258 = vunpack.c.l.b16 %v187
    %v259 = vunpack.c.l.b16 %v188
    %v260 = vunpack.c.l.b16 %v189
    %v261 = vunpack.c.l.b16 %v190
    %v262 = vunpack.c.l.b16 %v191
    %v263 = vunpack.c.l.b16 %v192
    %v264 = vunpack.c.l.b16 %v193
    %v265 = vunpack.c.l.b16 %v194
    %v266 = vunpack.c.l.b16 %v195
    %v267 = vunpack.c.l.b16 %v196
    %v268 = vunpack.c.l.b16 %v197
    %v269 = vunpack.c.l.b16 %v198
    %v270 = vunpack.c.l.b16 %v199
    %v271 = vunpack.c.l.b16 %v200
    %v272 = vunpack.c.l.b16 %v201
    %v273 = vunpack.c.l.b16 %v202
    %v274 = vunpack.c.l.b16 %v203
    %v275 = vunpack.c.l.b16 %v204
    %v276 = vunpack.c.l.b16 %v205
    %v277 = vunpack.c.l.b16 %v206
    %v278 = vunpack.c.l.b16 %v207
    %v279 = vpack.c.b16 %v248, %v247
    %v280 = vpack.c.b16 %v250, %v249
    %v281 = vpack.c.b16 %v252, %v251
    %v282 = vpack.c.b16 %v254, %v253
    %v283 = vpack.c.b16 %v256, %v255
    %v284 = vpack.c.b16 %v258, %v257
    %v285 = vpack.c.b16 %v260, %v259
    %v286 = vpack.c.b16 %v262, %v261
    %v287 = vpack.c.b16 %v264, %v263
    %v288 = vpack.c.b16 %v266, %v265
    %v289 = vpack.c.b16 %v268, %v267
    %v290 = vpack.c.b16 %v270, %v269
    %v291 = vpack.c.b16 %v272, %v271
    %v292 = vpack.c.b16 %v274, %v273
    %v293 = vpack.c.b16 %v276, %v275
    %v294 = vpack.c.b16 %v278, %v277
    %311 = vmatprep.subr.bf16.mxu0 0
    %312 = vmatpush1.bf16.msra.mxu0 %v279
    %313 = vmatprep.subr.bf16.mxu0 0
    %314 = vmatpush1.bf16.msra.mxu0 %v280
    %315 = vmatprep.subr.bf16.mxu0 0
    %316 = vmatpush1.bf16.msra.mxu0 %v281
    %317 = vmatprep.subr.bf16.mxu0 0
    %318 = vmatpush1.bf16.msra.mxu0 %v282
    %319 = vmatprep.subr.bf16.mxu0 0
    %320 = vmatpush1.bf16.msra.mxu0 %v283
    %321 = vmatprep.subr.bf16.mxu0 0
    %322 = vmatpush1.bf16.msra.mxu0 %v284
    %323 = vmatprep.subr.bf16.mxu0 0
    %324 = vmatpush1.bf16.msra.mxu0 %v285
    %325 = vmatprep.subr.bf16.mxu0 0
    %326 = vmatpush1.bf16.msra.mxu0 %v286
    %327 = vmatprep.subr.bf16.mxu0 0
    %328 = vmatpush1.bf16.msra.mxu0 %v287
    %329 = vmatprep.subr.bf16.mxu0 0
    %330 = vmatpush1.bf16.msra.mxu0 %v288
    %331 = vmatprep.subr.bf16.mxu0 0
    %332 = vmatpush1.bf16.msra.mxu0 %v289
    %333 = vmatprep.subr.bf16.mxu0 0
    %334 = vmatpush1.bf16.msra.mxu0 %v290
    %335 = vmatprep.subr.bf16.mxu0 0
    %336 = vmatpush1.bf16.msra.mxu0 %v291
    %337 = vmatprep.subr.bf16.mxu0 0
    %338 = vmatpush1.bf16.msra.mxu0 %v292
    %339 = vmatprep.subr.bf16.mxu0 0
    %340 = vmatpush1.bf16.msra.mxu0 %v293
    %341 = vmatprep.subr.bf16.mxu0 0
    %342 = vmatpush1.bf16.msra.mxu0 %v294
    %343 = vmatprep.mubr.bf16.mxu0 %v175
    %344 = vmatmul.mubr.bf16.gmra.mrb[0].mxu0 %v174
    %v345 = vpop.f32.mrb[0].mxu0
    %v346 = vadd.f32 %v213, %v345
    %v347 = vpop.f32.mrb[0].mxu0
    %v348 = vpop.f32.mrb[0].mxu0
    %v349 = vadd.f32 %v213, %v348
    %v350 = vpop.f32.mrb[0].mxu0
    %351 = vdwg.mxu0
    %v352 = vmax.f32 %v346, 0.0
    %v353 = vmax.f32 %v349, 0.0
    %v354 = vpack.c.bf16 %v353, %v352
    %v355 = vld [vmem:[#allocation2 + $0x4] sm:$0xf]
    %v356 = vld [vmem:[#allocation2 + $0x20] sm:$0xf]
    %v357 = vld [vmem:[#allocation2 + $0x3c] sm:$0xf]
    %v358 = vld [vmem:[#allocation2 + $0x58] sm:$0xf]
    %v359 = vld [vmem:[#allocation2 + $0x74] sm:$0xf]
    %v360 = vld [vmem:[#allocation2 + $0x90] sm:$0xf]
    %v361 = vld [vmem:[#allocation2 + $0xac] sm:$0xf]
    %v362 = vld [vmem:[#allocation2 + $0xc8] sm:$0xf]
    %v363 = vld [vmem:[#allocation2 + $0xe4] sm:$0xf]
    %v364 = vld [vmem:[#allocation2 + $0x100] sm:$0xf]
    %v365 = vld [vmem:[#allocation2 + $0x11c] sm:$0xf]
    %v366 = vld [vmem:[#allocation2 + $0x138] sm:$0xf]
    %v367 = vld [vmem:[#allocation2 + $0x154] sm:$0xf]
    %v368 = vld [vmem:[#allocation2 + $0x170] sm:$0xf]
    %v369 = vld [vmem:[#allocation2 + $0x18c] sm:$0xf]
    %v370 = vld [vmem:[#allocation2 + $0x1a8] sm:$0xf]
    %v371 = vld [vmem:[%s3 + $0x3] sm:$0x1]
    %v373 = vlaneseq
    %v374 = vshrl.u32 %v373, 7
    %v375 = vsub.s32 0, %v374
    %v376 = vrot.slane %v371, %v375
    %v394 = vunpack.c.l.b16 %v355
    %v395 = vunpack.c.l.b16 %v356
    %v396 = vunpack.c.l.b16 %v357
    %v397 = vunpack.c.l.b16 %v358
    %v398 = vunpack.c.l.b16 %v359
    %v399 = vunpack.c.l.b16 %v360
    %v400 = vunpack.c.l.b16 %v361
    %v401 = vunpack.c.l.b16 %v362
    %v402 = vunpack.c.l.b16 %v363
    %v403 = vunpack.c.l.b16 %v364
    %v404 = vunpack.c.l.b16 %v365
    %v405 = vunpack.c.l.b16 %v366
    %v406 = vunpack.c.l.b16 %v367
    %v407 = vunpack.c.l.b16 %v368
    %v408 = vunpack.c.l.b16 %v369
    %v409 = vunpack.c.l.b16 %v370
    %v410 = vpack.c.b16 %v395, %v394
    %v411 = vpack.c.b16 %v397, %v396
    %v412 = vpack.c.b16 %v399, %v398
    %v413 = vpack.c.b16 %v401, %v400
    %v414 = vpack.c.b16 %v403, %v402
    %v415 = vpack.c.b16 %v405, %v404
    %v416 = vpack.c.b16 %v407, %v406
    %v417 = vpack.c.b16 %v409, %v408
    %426 = vmatprep.subr.bf16.mxu0 0
    %427 = vmatpush1.bf16.msra.mxu0 %v410
    %428 = vmatprep.subr.bf16.mxu0 0
    %429 = vmatpush1.bf16.msra.mxu0 %v411
    %430 = vmatprep.subr.bf16.mxu0 0
    %431 = vmatpush1.bf16.msra.mxu0 %v412
    %432 = vmatprep.subr.bf16.mxu0 0
    %433 = vmatpush1.bf16.msra.mxu0 %v413
    %434 = vmatprep.subr.bf16.mxu0 0
    %435 = vmatpush1.bf16.msra.mxu0 %v414
    %436 = vmatprep.subr.bf16.mxu0 0
    %437 = vmatpush1.bf16.msra.mxu0 %v415
    %438 = vmatprep.subr.bf16.mxu0 0
    %439 = vmatpush1.bf16.msra.mxu0 %v416
    %440 = vmatprep.subr.bf16.mxu0 0
    %441 = vmatpush1.bf16.msra.mxu0 %v417
    %442 = vmatprep.subr.bf16.mxu0 0
    %443 = vmatpush1.bf16.msra.mxu0 0
    %444 = vmatprep.subr.bf16.mxu0 0
    %445 = vmatpush1.bf16.msra.mxu0 0
    %446 = vmatprep.subr.bf16.mxu0 0
    %447 = vmatpush1.bf16.msra.mxu0 0
    %448 = vmatprep.subr.bf16.mxu0 0
    %449 = vmatpush1.bf16.msra.mxu0 0
    %450 = vmatprep.subr.bf16.mxu0 0
    %451 = vmatpush1.bf16.msra.mxu0 0
    %452 = vmatprep.subr.bf16.mxu0 0
    %453 = vmatpush1.bf16.msra.mxu0 0
    %454 = vmatprep.subr.bf16.mxu0 0
    %455 = vmatpush1.bf16.msra.mxu0 0
    %456 = vmatprep.subr.bf16.mxu0 0
    %457 = vmatpush1.bf16.msra.mxu0 0
    %458 = vmatprep.mubr.bf16.mxu0 0
    %459 = vmatmul.mubr.bf16.gmra.mrb[0].mxu0 %v354
    %v460 = vpop.f32.mrb[0].mxu0
    %v461 = vadd.f32 %v376, %v460
    %v462 = vpop.f32.mrb[0].mxu0
    %v463 = vpop.f32.mrb[0].mxu0
    %v464 = vadd.f32 %v376, %v463
    %v465 = vpop.f32.mrb[0].mxu0
    %466 = vdwg.mxu0
    %v467 = vmax.f32 %v461, 0.0
    %v468 = vmax.f32 %v464, 0.0
    %v469 = vpack.c.bf16 %v468, %v467
    %v470 = vld [vmem:[#allocation2 + $0x8] sm:$0xff]
    %v471 = vld [vmem:[#allocation2 + $0x24] sm:$0xff]
    %v472 = vld [vmem:[#allocation2 + $0x40] sm:$0xff]
    %v473 = vld [vmem:[#allocation2 + $0x5c] sm:$0xff]
    %v474 = vld [vmem:[#allocation2 + $0x78] sm:$0xff]
    %v475 = vld [vmem:[#allocation2 + $0x94] sm:$0xff]
    %v476 = vld [vmem:[#allocation2 + $0xb0] sm:$0xff]
    %v477 = vld [vmem:[#allocation2 + $0xcc] sm:$0xff]
    %v478 = vld [vmem:[#allocation2 + $0xe8] sm:$0xff]
    %v479 = vld [vmem:[#allocation2 + $0x104] sm:$0xff]
    %v480 = vld [vmem:[#allocation2 + $0x120] sm:$0xff]
    %v481 = vld [vmem:[#allocation2 + $0x13c] sm:$0xff]
    %v482 = vld [vmem:[#allocation2 + $0x158] sm:$0xff]
    %v483 = vld [vmem:[#allocation2 + $0x174] sm:$0xff]
    %v484 = vld [vmem:[#allocation2 + $0x190] sm:$0xff]
    %v485 = vld [vmem:[#allocation2 + $0x1ac] sm:$0xff]
    %v486 = vld [vmem:[%s3 + $0x4] sm:$0x3]
    %v488 = vlaneseq
    %v489 = vshrl.u32 %v488, 7
    %v490 = vsub.s32 0, %v489
    %v491 = vrot.slane %v486, %v490
    %v492 = vlaneseq
    %v493 = vshrl.u32 %v492, 7
    %v494 = vsub.s32 1, %v493
    %v495 = vrot.slane %v486, %v494
    %v514 = vunpack.c.l.b16 %v470
    %v515 = vunpack.c.h.b16 %v470
    %v516 = vunpack.c.l.b16 %v471
    %v517 = vunpack.c.h.b16 %v471
    %v518 = vunpack.c.l.b16 %v472
    %v519 = vunpack.c.h.b16 %v472
    %v520 = vunpack.c.l.b16 %v473
    %v521 = vunpack.c.h.b16 %v473
    %v522 = vunpack.c.l.b16 %v474
    %v523 = vunpack.c.h.b16 %v474
    %v524 = vunpack.c.l.b16 %v475
    %v525 = vunpack.c.h.b16 %v475
    %v526 = vunpack.c.l.b16 %v476
    %v527 = vunpack.c.h.b16 %v476
    %v528 = vunpack.c.l.b16 %v477
    %v529 = vunpack.c.h.b16 %v477
    %v530 = vunpack.c.l.b16 %v478
    %v531 = vunpack.c.h.b16 %v478
    %v532 = vunpack.c.l.b16 %v479
    %v533 = vunpack.c.h.b16 %v479
    %v534 = vunpack.c.l.b16 %v480
    %v535 = vunpack.c.h.b16 %v480
    %v536 = vunpack.c.l.b16 %v481
    %v537 = vunpack.c.h.b16 %v481
    %v538 = vunpack.c.l.b16 %v482
    %v539 = vunpack.c.h.b16 %v482
    %v540 = vunpack.c.l.b16 %v483
    %v541 = vunpack.c.h.b16 %v483
    %v542 = vunpack.c.l.b16 %v484
    %v543 = vunpack.c.h.b16 %v484
    %v544 = vunpack.c.l.b16 %v485
    %v545 = vunpack.c.h.b16 %v485
    %v546 = vpack.c.b16 %v516, %v514
    %v547 = vpack.c.b16 %v517, %v515
    %v548 = vpack.c.b16 %v520, %v518
    %v549 = vpack.c.b16 %v521, %v519
    %v550 = vpack.c.b16 %v524, %v522
    %v551 = vpack.c.b16 %v525, %v523
    %v552 = vpack.c.b16 %v528, %v526
    %v553 = vpack.c.b16 %v529, %v527
    %v554 = vpack.c.b16 %v532, %v530
    %v555 = vpack.c.b16 %v533, %v531
    %v556 = vpack.c.b16 %v536, %v534
    %v557 = vpack.c.b16 %v537, %v535
    %v558 = vpack.c.b16 %v540, %v538
    %v559 = vpack.c.b16 %v541, %v539
    %v560 = vpack.c.b16 %v544, %v542
    %v561 = vpack.c.b16 %v545, %v543
    %578 = vmatprep.subr.bf16.mxu0 %v547
    %579 = vmatpush1.bf16.msra.mxu0 %v546
    %580 = vmatprep.subr.bf16.mxu0 %v549
    %581 = vmatpush1.bf16.msra.mxu0 %v548
    %582 = vmatprep.subr.bf16.mxu0 %v551
    %583 = vmatpush1.bf16.msra.mxu0 %v550
    %584 = vmatprep.subr.bf16.mxu0 %v553
    %585 = vmatpush1.bf16.msra.mxu0 %v552
    %586 = vmatprep.subr.bf16.mxu0 %v555
    %587 = vmatpush1.bf16.msra.mxu0 %v554
    %588 = vmatprep.subr.bf16.mxu0 %v557
    %589 = vmatpush1.bf16.msra.mxu0 %v556
    %590 = vmatprep.subr.bf16.mxu0 %v559
    %591 = vmatpush1.bf16.msra.mxu0 %v558
    %592 = vmatprep.subr.bf16.mxu0 %v561
    %593 = vmatpush1.bf16.msra.mxu0 %v560
    %594 = vmatprep.subr.bf16.mxu0 0
    %595 = vmatpush1.bf16.msra.mxu0 0
    %596 = vmatprep.subr.bf16.mxu0 0
    %597 = vmatpush1.bf16.msra.mxu0 0
    %598 = vmatprep.subr.bf16.mxu0 0
    %599 = vmatpush1.bf16.msra.mxu0 0
    %600 = vmatprep.subr.bf16.mxu0 0
    %601 = vmatpush1.bf16.msra.mxu0 0
    %602 = vmatprep.subr.bf16.mxu0 0
    %603 = vmatpush1.bf16.msra.mxu0 0
    %604 = vmatprep.subr.bf16.mxu0 0
    %605 = vmatpush1.bf16.msra.mxu0 0
    %606 = vmatprep.subr.bf16.mxu0 0
    %607 = vmatpush1.bf16.msra.mxu0 0
    %608 = vmatprep.subr.bf16.mxu0 0
    %609 = vmatpush1.bf16.msra.mxu0 0
    %610 = vmatprep.mubr.bf16.mxu0 0
    %611 = vmatmul.mubr.bf16.gmra.mrb[0].mxu0 %v469
    %v612 = vpop.f32.mrb[0].mxu0
    %v613 = vadd.f32 %v491, %v612
    %v614 = vpop.f32.mrb[0].mxu0
    %v615 = vadd.f32 %v495, %v614
    %v616 = vpop.f32.mrb[0].mxu0
    %v617 = vadd.f32 %v491, %v616
    %v618 = vpop.f32.mrb[0].mxu0
    %v619 = vadd.f32 %v495, %v618
    %620 = vdwg.mxu0
    %v621 = vmax.f32 %v613, 0.0
    %v622 = vmax.f32 %v615, 0.0
    %v623 = vmax.f32 %v617, 0.0
    %v624 = vmax.f32 %v619, 0.0
    %v625 = vpack.c.bf16 %v623, %v621
    %v626 = vpack.c.bf16 %v624, %v622
    %v627 = vld [vmem:[#allocation2 + $0x10] sm:$0xf]
    %v628 = vld [vmem:[#allocation2 + $0x2c] sm:$0xf]
    %v629 = vld [vmem:[#allocation2 + $0x48] sm:$0xf]
    %v630 = vld [vmem:[#allocation2 + $0x64] sm:$0xf]
    %v631 = vld [vmem:[#allocation2 + $0x80] sm:$0xf]
    %v632 = vld [vmem:[#allocation2 + $0x9c] sm:$0xf]
    %v633 = vld [vmem:[#allocation2 + $0xb8] sm:$0xf]
    %v634 = vld [vmem:[#allocation2 + $0xd4] sm:$0xf]
    %v635 = vld [vmem:[#allocation2 + $0xf0] sm:$0xf]
    %v636 = vld [vmem:[#allocation2 + $0x10c] sm:$0xf]
    %v637 = vld [vmem:[#allocation2 + $0x128] sm:$0xf]
    %v638 = vld [vmem:[#allocation2 + $0x144] sm:$0xf]
    %v639 = vld [vmem:[#allocation2 + $0x160] sm:$0xf]
    %v640 = vld [vmem:[#allocation2 + $0x17c] sm:$0xf]
    %v641 = vld [vmem:[#allocation2 + $0x198] sm:$0xf]
    %v642 = vld [vmem:[#allocation2 + $0x1b4] sm:$0xf]
    %v643 = vld [vmem:[#allocation2 + $0x1d0] sm:$0xf]
    %v644 = vld [vmem:[#allocation2 + $0x1ec] sm:$0xf]
    %v645 = vld [vmem:[#allocation2 + $0x208] sm:$0xf]
    %v646 = vld [vmem:[#allocation2 + $0x224] sm:$0xf]
    %v647 = vld [vmem:[#allocation2 + $0x240] sm:$0xf]
    %v648 = vld [vmem:[#allocation2 + $0x25c] sm:$0xf]
    %v649 = vld [vmem:[#allocation2 + $0x278] sm:$0xf]
    %v650 = vld [vmem:[#allocation2 + $0x294] sm:$0xf]
    %v651 = vld [vmem:[#allocation2 + $0x2b0] sm:$0xf]
    %v652 = vld [vmem:[#allocation2 + $0x2cc] sm:$0xf]
    %v653 = vld [vmem:[#allocation2 + $0x2e8] sm:$0xf]
    %v654 = vld [vmem:[#allocation2 + $0x304] sm:$0xf]
    %v655 = vld [vmem:[#allocation2 + $0x320] sm:$0xf]
    %v656 = vld [vmem:[#allocation2 + $0x33c] sm:$0xf]
    %v657 = vld [vmem:[#allocation2 + $0x358] sm:$0xf]
    %v658 = vld [vmem:[#allocation2 + $0x374] sm:$0xf]
    %v659 = vld [vmem:[%s3 + $0x6] sm:$0x1]
    %v661 = vlaneseq
    %v662 = vshrl.u32 %v661, 7
    %v663 = vsub.s32 0, %v662
    %v664 = vrot.slane %v659, %v663
    %v698 = vunpack.c.l.b16 %v627
    %v699 = vunpack.c.l.b16 %v628
    %v700 = vunpack.c.l.b16 %v629
    %v701 = vunpack.c.l.b16 %v630
    %v702 = vunpack.c.l.b16 %v631
    %v703 = vunpack.c.l.b16 %v632
    %v704 = vunpack.c.l.b16 %v633
    %v705 = vunpack.c.l.b16 %v634
    %v706 = vunpack.c.l.b16 %v635
    %v707 = vunpack.c.l.b16 %v636
    %v708 = vunpack.c.l.b16 %v637
    %v709 = vunpack.c.l.b16 %v638
    %v710 = vunpack.c.l.b16 %v639
    %v711 = vunpack.c.l.b16 %v640
    %v712 = vunpack.c.l.b16 %v641
    %v713 = vunpack.c.l.b16 %v642
    %v714 = vunpack.c.l.b16 %v643
    %v715 = vunpack.c.l.b16 %v644
    %v716 = vunpack.c.l.b16 %v645
    %v717 = vunpack.c.l.b16 %v646
    %v718 = vunpack.c.l.b16 %v647
    %v719 = vunpack.c.l.b16 %v648
    %v720 = vunpack.c.l.b16 %v649
    %v721 = vunpack.c.l.b16 %v650
    %v722 = vunpack.c.l.b16 %v651
    %v723 = vunpack.c.l.b16 %v652
    %v724 = vunpack.c.l.b16 %v653
    %v725 = vunpack.c.l.b16 %v654
    %v726 = vunpack.c.l.b16 %v655
    %v727 = vunpack.c.l.b16 %v656
    %v728 = vunpack.c.l.b16 %v657
    %v729 = vunpack.c.l.b16 %v658
    %v730 = vpack.c.b16 %v699, %v698
    %v731 = vpack.c.b16 %v701, %v700
    %v732 = vpack.c.b16 %v703, %v702
    %v733 = vpack.c.b16 %v705, %v704
    %v734 = vpack.c.b16 %v707, %v706
    %v735 = vpack.c.b16 %v709, %v708
    %v736 = vpack.c.b16 %v711, %v710
    %v737 = vpack.c.b16 %v713, %v712
    %v738 = vpack.c.b16 %v715, %v714
    %v739 = vpack.c.b16 %v717, %v716
    %v740 = vpack.c.b16 %v719, %v718
    %v741 = vpack.c.b16 %v721, %v720
    %v742 = vpack.c.b16 %v723, %v722
    %v743 = vpack.c.b16 %v725, %v724
    %v744 = vpack.c.b16 %v727, %v726
    %v745 = vpack.c.b16 %v729, %v728
    %762 = vmatprep.subr.bf16.mxu0 0
    %763 = vmatpush1.bf16.msra.mxu0 %v730
    %764 = vmatprep.subr.bf16.mxu0 0
    %765 = vmatpush1.bf16.msra.mxu0 %v731
    %766 = vmatprep.subr.bf16.mxu0 0
    %767 = vmatpush1.bf16.msra.mxu0 %v732
    %768 = vmatprep.subr.bf16.mxu0 0
    %769 = vmatpush1.bf16.msra.mxu0 %v733
    %770 = vmatprep.subr.bf16.mxu0 0
    %771 = vmatpush1.bf16.msra.mxu0 %v734
    %772 = vmatprep.subr.bf16.mxu0 0
    %773 = vmatpush1.bf16.msra.mxu0 %v735
    %774 = vmatprep.subr.bf16.mxu0 0
    %775 = vmatpush1.bf16.msra.mxu0 %v736
    %776 = vmatprep.subr.bf16.mxu0 0
    %777 = vmatpush1.bf16.msra.mxu0 %v737
    %778 = vmatprep.subr.bf16.mxu0 0
    %779 = vmatpush1.bf16.msra.mxu0 %v738
    %780 = vmatprep.subr.bf16.mxu0 0
    %781 = vmatpush1.bf16.msra.mxu0 %v739
    %782 = vmatprep.subr.bf16.mxu0 0
    %783 = vmatpush1.bf16.msra.mxu0 %v740
    %784 = vmatprep.subr.bf16.mxu0 0
    %785 = vmatpush1.bf16.msra.mxu0 %v741
    %786 = vmatprep.subr.bf16.mxu0 0
    %787 = vmatpush1.bf16.msra.mxu0 %v742
    %788 = vmatprep.subr.bf16.mxu0 0
    %789 = vmatpush1.bf16.msra.mxu0 %v743
    %790 = vmatprep.subr.bf16.mxu0 0
    %791 = vmatpush1.bf16.msra.mxu0 %v744
    %792 = vmatprep.subr.bf16.mxu0 0
    %793 = vmatpush1.bf16.msra.mxu0 %v745
    %794 = vmatprep.mubr.bf16.mxu0 %v626
    %795 = vmatmul.mubr.bf16.gmra.mrb[0].mxu0 %v625
    %v796 = vpop.f32.mrb[0].mxu0
    %v797 = vadd.f32 %v664, %v796
    %v798 = vpop.f32.mrb[0].mxu0
    %v799 = vpop.f32.mrb[0].mxu0
    %v800 = vadd.f32 %v664, %v799
    %v801 = vpop.f32.mrb[0].mxu0
    %802 = vdwg.mxu0
    %v803 = vmax.f32 %v797, 0.0
    %v804 = vmax.f32 %v800, 0.0
    %v805 = vpack.c.bf16 %v804, %v803
    %v806 = vld [vmem:[#allocation2 + $0x14] sm:$0xf]
    %v807 = vld [vmem:[#allocation2 + $0x30] sm:$0xf]
    %v808 = vld [vmem:[#allocation2 + $0x4c] sm:$0xf]
    %v809 = vld [vmem:[#allocation2 + $0x68] sm:$0xf]
    %v810 = vld [vmem:[#allocation2 + $0x84] sm:$0xf]
    %v811 = vld [vmem:[#allocation2 + $0xa0] sm:$0xf]
    %v812 = vld [vmem:[#allocation2 + $0xbc] sm:$0xf]
    %v813 = vld [vmem:[#allocation2 + $0xd8] sm:$0xf]
    %v814 = vld [vmem:[#allocation2 + $0xf4] sm:$0xf]
    %v815 = vld [vmem:[#allocation2 + $0x110] sm:$0xf]
    %v816 = vld [vmem:[#allocation2 + $0x12c] sm:$0xf]
    %v817 = vld [vmem:[#allocation2 + $0x148] sm:$0xf]
    %v818 = vld [vmem:[#allocation2 + $0x164] sm:$0xf]
    %v819 = vld [vmem:[#allocation2 + $0x180] sm:$0xf]
    %v820 = vld [vmem:[#allocation2 + $0x19c] sm:$0xf]
    %v821 = vld [vmem:[#allocation2 + $0x1b8] sm:$0xf]
    %v822 = vld [vmem:[%s3 + $0x7] sm:$0x1]
    %v824 = vlaneseq
    %v825 = vshrl.u32 %v824, 7
    %v826 = vsub.s32 0, %v825
    %v827 = vrot.slane %v822, %v826
    %v845 = vunpack.c.l.b16 %v806
    %v846 = vunpack.c.l.b16 %v807
    %v847 = vunpack.c.l.b16 %v808
    %v848 = vunpack.c.l.b16 %v809
    %v849 = vunpack.c.l.b16 %v810
    %v850 = vunpack.c.l.b16 %v811
    %v851 = vunpack.c.l.b16 %v812
    %v852 = vunpack.c.l.b16 %v813
    %v853 = vunpack.c.l.b16 %v814
    %v854 = vunpack.c.l.b16 %v815
    %v855 = vunpack.c.l.b16 %v816
    %v856 = vunpack.c.l.b16 %v817
    %v857 = vunpack.c.l.b16 %v818
    %v858 = vunpack.c.l.b16 %v819
    %v859 = vunpack.c.l.b16 %v820
    %v860 = vunpack.c.l.b16 %v821
    %v861 = vpack.c.b16 %v846, %v845
    %v862 = vpack.c.b16 %v848, %v847
    %v863 = vpack.c.b16 %v850, %v849
    %v864 = vpack.c.b16 %v852, %v851
    %v865 = vpack.c.b16 %v854, %v853
    %v866 = vpack.c.b16 %v856, %v855
    %v867 = vpack.c.b16 %v858, %v857
    %v868 = vpack.c.b16 %v860, %v859
    %877 = vmatprep.subr.bf16.mxu0 0
    %878 = vmatpush1.bf16.msra.mxu0 %v861
    %879 = vmatprep.subr.bf16.mxu0 0
    %880 = vmatpush1.bf16.msra.mxu0 %v862
    %881 = vmatprep.subr.bf16.mxu0 0
    %882 = vmatpush1.bf16.msra.mxu0 %v863
    %883 = vmatprep.subr.bf16.mxu0 0
    %884 = vmatpush1.bf16.msra.mxu0 %v864
    %885 = vmatprep.subr.bf16.mxu0 0
    %886 = vmatpush1.bf16.msra.mxu0 %v865
    %887 = vmatprep.subr.bf16.mxu0 0
    %888 = vmatpush1.bf16.msra.mxu0 %v866
    %889 = vmatprep.subr.bf16.mxu0 0
    %890 = vmatpush1.bf16.msra.mxu0 %v867
    %891 = vmatprep.subr.bf16.mxu0 0
    %892 = vmatpush1.bf16.msra.mxu0 %v868
    %893 = vmatprep.subr.bf16.mxu0 0
    %894 = vmatpush1.bf16.msra.mxu0 0
    %895 = vmatprep.subr.bf16.mxu0 0
    %896 = vmatpush1.bf16.msra.mxu0 0
    %897 = vmatprep.subr.bf16.mxu0 0
    %898 = vmatpush1.bf16.msra.mxu0 0
    %899 = vmatprep.subr.bf16.mxu0 0
    %900 = vmatpush1.bf16.msra.mxu0 0
    %901 = vmatprep.subr.bf16.mxu0 0
    %902 = vmatpush1.bf16.msra.mxu0 0
    %903 = vmatprep.subr.bf16.mxu0 0
    %904 = vmatpush1.bf16.msra.mxu0 0
    %905 = vmatprep.subr.bf16.mxu0 0
    %906 = vmatpush1.bf16.msra.mxu0 0
    %907 = vmatprep.subr.bf16.mxu0 0
    %908 = vmatpush1.bf16.msra.mxu0 0
    %909 = vmatprep.mubr.bf16.mxu0 0
    %910 = vmatmul.mubr.bf16.gmra.mrb[0].mxu0 %v805
    %v911 = vpop.f32.mrb[0].mxu0
    %v912 = vadd.f32 %v827, %v911
    %v913 = vpop.f32.mrb[0].mxu0
    %v914 = vpop.f32.mrb[0].mxu0
    %v915 = vadd.f32 %v827, %v914
    %v916 = vpop.f32.mrb[0].mxu0
    %917 = vdwg.mxu0
    %v918 = vmax.f32 %v912, 0.0
    %v919 = vmax.f32 %v915, 0.0
    %v920 = vpack.c.bf16 %v919, %v918
    %v921 = vld [vmem:[#allocation2 + $0x18] sm:$0xf]
    %v922 = vld [vmem:[#allocation2 + $0x34] sm:$0xf]
    %v923 = vld [vmem:[#allocation2 + $0x50] sm:$0xf]
    %v924 = vld [vmem:[#allocation2 + $0x6c] sm:$0xf]
    %v925 = vld [vmem:[#allocation2 + $0x88] sm:$0xf]
    %v926 = vld [vmem:[#allocation2 + $0xa4] sm:$0xf]
    %v927 = vld [vmem:[#allocation2 + $0xc0] sm:$0xf]
    %v928 = vld [vmem:[#allocation2 + $0xdc] sm:$0xf]
    %v929 = vld [vmem:[#allocation2 + $0xf8] sm:$0xf]
    %v930 = vld [vmem:[#allocation2 + $0x114] sm:$0xf]
    %v931 = vld [vmem:[#allocation2 + $0x130] sm:$0xf]
    %v932 = vld [vmem:[#allocation2 + $0x14c] sm:$0xf]
    %v933 = vld [vmem:[#allocation2 + $0x168] sm:$0xf]
    %v934 = vld [vmem:[#allocation2 + $0x184] sm:$0xf]
    %v935 = vld [vmem:[#allocation2 + $0x1a0] sm:$0xf]
    %v936 = vld [vmem:[#allocation2 + $0x1bc] sm:$0xf]
    %v937 = vld [vmem:[%s3 + $0x8] sm:$0x1]
    %v939 = vlaneseq
    %v940 = vshrl.u32 %v939, 7
    %v941 = vsub.s32 0, %v940
    %v942 = vrot.slane %v937, %v941
    %v960 = vunpack.c.l.b16 %v921
    %v961 = vunpack.c.l.b16 %v922
    %v962 = vunpack.c.l.b16 %v923
    %v963 = vunpack.c.l.b16 %v924
    %v964 = vunpack.c.l.b16 %v925
    %v965 = vunpack.c.l.b16 %v926
    %v966 = vunpack.c.l.b16 %v927
    %v967 = vunpack.c.l.b16 %v928
    %v968 = vunpack.c.l.b16 %v929
    %v969 = vunpack.c.l.b16 %v930
    %v970 = vunpack.c.l.b16 %v931
    %v971 = vunpack.c.l.b16 %v932
    %v972 = vunpack.c.l.b16 %v933
    %v973 = vunpack.c.l.b16 %v934
    %v974 = vunpack.c.l.b16 %v935
    %v975 = vunpack.c.l.b16 %v936
    %v976 = vpack.c.b16 %v961, %v960
    %v977 = vpack.c.b16 %v963, %v962
    %v978 = vpack.c.b16 %v965, %v964
    %v979 = vpack.c.b16 %v967, %v966
    %v980 = vpack.c.b16 %v969, %v968
    %v981 = vpack.c.b16 %v971, %v970
    %v982 = vpack.c.b16 %v973, %v972
    %v983 = vpack.c.b16 %v975, %v974
    %992 = vmatprep.subr.bf16.mxu0 0
    %993 = vmatpush1.bf16.msra.mxu0 %v976
    %994 = vmatprep.subr.bf16.mxu0 0
    %995 = vmatpush1.bf16.msra.mxu0 %v977
    %996 = vmatprep.subr.bf16.mxu0 0
    %997 = vmatpush1.bf16.msra.mxu0 %v978
    %998 = vmatprep.subr.bf16.mxu0 0
    %999 = vmatpush1.bf16.msra.mxu0 %v979
    %1000 = vmatprep.subr.bf16.mxu0 0
    %1001 = vmatpush1.bf16.msra.mxu0 %v980
    %1002 = vmatprep.subr.bf16.mxu0 0
    %1003 = vmatpush1.bf16.msra.mxu0 %v981
    %1004 = vmatprep.subr.bf16.mxu0 0
    %1005 = vmatpush1.bf16.msra.mxu0 %v982
    %1006 = vmatprep.subr.bf16.mxu0 0
    %1007 = vmatpush1.bf16.msra.mxu0 %v983
    %1008 = vmatprep.subr.bf16.mxu0 0
    %1009 = vmatpush1.bf16.msra.mxu0 0
    %1010 = vmatprep.subr.bf16.mxu0 0
    %1011 = vmatpush1.bf16.msra.mxu0 0
    %1012 = vmatprep.subr.bf16.mxu0 0
    %1013 = vmatpush1.bf16.msra.mxu0 0
    %1014 = vmatprep.subr.bf16.mxu0 0
    %1015 = vmatpush1.bf16.msra.mxu0 0
    %1016 = vmatprep.subr.bf16.mxu0 0
    %1017 = vmatpush1.bf16.msra.mxu0 0
    %1018 = vmatprep.subr.bf16.mxu0 0
    %1019 = vmatpush1.bf16.msra.mxu0 0
    %1020 = vmatprep.subr.bf16.mxu0 0
    %1021 = vmatpush1.bf16.msra.mxu0 0
    %1022 = vmatprep.subr.bf16.mxu0 0
    %1023 = vmatpush1.bf16.msra.mxu0 0
    %1024 = vmatprep.mubr.bf16.mxu0 0
    %1025 = vmatmul.mubr.bf16.gmra.mrb[0].mxu0 %v920
    %v1026 = vpop.f32.mrb[0].mxu0
    %v1027 = vadd.f32 %v942, %v1026
    %v1028 = vpop.f32.mrb[0].mxu0
    %v1029 = vpop.f32.mrb[0].mxu0
    %v1030 = vadd.f32 %v942, %v1029
    %v1031 = vpop.f32.mrb[0].mxu0
    %1032 = vdwg.mxu0
    %1033 = vmax.xlane.f32.xlu0 %v1027
    %v1034 = vpop.xlane.xlu0 %1033
    %1035 = vmax.xlane.f32.xlu0 %v1030
    %v1036 = vpop.xlane.xlu0 %1035
    %v1037 = vsub.f32 %v1027, %v1034
    %v1038 = vsub.f32 %v1030, %v1036
    %v1039 = vmul.f32 %v1037, 1.442695
    %v1040 = vpow.pop %v1039
    %v1041 = vmul.f32 %v1038, 1.442695
    %v1042 = vpow.pop %v1041
    %1043 = vadd.xlane.f32.xlu0 %v1040
    %v1044 = vpop.xlane.xlu0 %1043
    %1045 = vadd.xlane.f32.xlu0 %v1042
    %v1046 = vpop.xlane.xlu0 %1045
    %v1047 = vlog2.pop %v1044
    %v1048 = vmul.f32 %v1047, 0.6931472
    %v1049 = vlog2.pop %v1046
    %v1050 = vmul.f32 %v1049, 0.6931472
    %v1051 = vsub.f32 %v1037, %v1048
    %v1052 = vsub.f32 %v1038, %v1050
    %1053 = vst [vmem:[%s4] sm:$0xff] %v1051
    %1054 = vst [vmem:[%s4 + $0x8] sm:$0xff] %v1052
    // Predicated region
    $region22: #{mlp_forward.1} parent=1 // pred_check
      _
    $region23: #{mlp_forward.1} parent=1 // pred_check_branch
      %1056 = sbr.rel (0) target = $region25
    $region24: #{mlp_forward.1} parent=1 // pred_region
      _
    $region25: #{mlp_forward.1} parent=1 // pred_fallthru
      _
    // Predicated region
    $region26: #{mlp_forward.1} parent=1 // pred_check
      _
    $region27: #{mlp_forward.1} parent=1 // pred_check_branch
      %1058 = sbr.rel (0) target = $region29
    $region28: #{mlp_forward.1} parent=1 // pred_region
      _
    $region29: #{mlp_forward.1} parent=1 // pred_fallthru
      _
    %1059 = vsyncpa [#allocation3], 1

</llo_original>
